<compile_context>
chip_gen: v7x
topology: tpu7x:2x2x1
jax: 0.10.0
libtpu: 0.0.40
codegen_flags: <defaults>
</compile_context>

<pallas_src>
import functools

import jax
import jax.numpy as jnp
from jax.experimental import pallas as pl
from jax.experimental.pallas import tpu as pltpu

# ----------------------------- hyperparameters ------------------------------
NUM_LAYERS = 2        # number of GCNConv layers (>= 2)
HIDDEN = 32           # hidden_channels
DENSE_UNITS = 16      # dense_units
IN_FEATS = 3          # GCN input node feature dim (conv_type(3, hidden_channels))
NUM_NODES = 16        # nodes per graph-batch
NUM_GRAPHS = 2        # graphs per graph-batch (for global_mean_pool)
NUM_BATCHES = 4       # graph-batches processed per pallas_call

assert NUM_LAYERS >= 2


# ------------------------------ Pallas kernel -------------------------------
def gcn_kernel(adjT_ref, xT_ref, poolT_ref, w_ref, col_ref, out_ref, *,
               num_layers):
    """One grid step = one chunk of graph-batches, block-diagonal, transposed.

    adjT_ref : [1, M, M]      A_hat^T, block-diagonal over the chunk
    xT_ref   : [1, H, M]      node features, transposed, 3 zero-padded to H rows
    poolT_ref: [1, M, GB]     mean-pool matrix transposed (block-diagonal)
    w_ref    : [L+1, H, H]    transposed weights: conv layers 0..L-1, fc1 at L
                              (layer 0 cols 3.., fc1 rows D.. are zero)
    col_ref  : [H, L+3]       columns: conv biases 0..L-1, fc1 bias (L),
                              fc2 weight (L+1), fc2 bias at [0, L+2]
    out_ref  : [1, 1, GB]     lane-dense output slab (GB = graphs in chunk)
    """
    adjT = adjT_ref[0]                   # [M, M]
    xT = xT_ref[0]                       # [H, M]
    cols = col_ref[...]                  # [H, L+3]

    # conv stack, transposed:  x_{l+1}^T = relu(W_l^T @ x_l^T @ A_hat^T + b_l)
    # (static unroll; switch to lax.fori_loop(..., unroll=True) if L grows)
    for l in range(num_layers):
        wx = jnp.dot(w_ref[l], xT, preferred_element_type=jnp.float32)        # [H, M]
        xT = jnp.maximum(
            jnp.dot(wx, adjT, preferred_element_type=jnp.float32)
            + cols[:, l:l + 1], 0.0)                                          # ReLU; dropout=id

    # global mean pool (transposed):  pooled^T = x_L^T @ P^T     -> [H, GB]
    pooledT = jnp.dot(xT, poolT_ref[0], preferred_element_type=jnp.float32)

    # fc1 (+ ReLU), transposed; rows >= DENSE_UNITS stay zero by construction
    hT = jnp.maximum(
        jnp.dot(w_ref[num_layers], pooledT, preferred_element_type=jnp.float32)
        + cols[:, num_layers:num_layers + 1], 0.0)                            # [H, GB]

    # fc2 as VPU multiply + sublane reduction (graphs stay on lanes)
    out = (jnp.sum(hT * cols[:, num_layers + 1:num_layers + 2],
                   axis=0, keepdims=True)
           + cols[0:1, num_layers + 2:num_layers + 3])                        # [1, GB]
    out_ref[0] = out


# ------------------------------- JAX glue ------------------------------------
def build_normalized_adjacency(edge_index, num_nodes):
    """Dense A_hat = D^{-1/2} (A + I) D^{-1/2}; aggregation into edge target.

    NOTE: assumes edge_index carries no pre-existing self-loops (true for the
    synthetic data below); deduplicate in the glue otherwise to match gcn_norm.
    """
    src, dst = edge_index[0], edge_index[1]
    adj = jnp.zeros((num_nodes, num_nodes), jnp.float32).at[dst, src].add(1.0)
    adj = adj + jnp.eye(num_nodes, dtype=jnp.float32)        # self loops
    deg = jnp.sum(adj, axis=1)
    dinv = jnp.where(deg > 0, 1.0 / jnp.sqrt(deg), 0.0)
    return dinv[:, None] * adj * dinv[None, :]


def build_mean_pool_matrix_T(batch, num_graphs):
    """P^T: [N, G] with columns = onehot(graph)/count."""
    onehot = (batch[:, None] == jnp.arange(num_graphs)[None, :]).astype(jnp.float32)
    counts = jnp.maximum(jnp.sum(onehot, axis=0, keepdims=True), 1.0)
    return onehot / counts


def _block_diag(blocks):
    """[B, r, c] -> [B*r, B*c] block-diagonal (single batched op, no unroll)."""
    B, r, c = blocks.shape
    eye = jnp.eye(B, dtype=blocks.dtype)
    return jnp.einsum('bij,bd->bidj', blocks, eye).reshape(B * r, B * c)


def _num_chunks_for_device(batch):
    """2 chunks on v7x (2 TensorCores/chip), 1 on v5e/v6e."""
    try:
        kind = jax.devices()[0].device_kind.lower()
    except Exception:
        return 1
    nc = 2 if "v7" in kind else 1
    while nc > 1 and batch % nc:
        nc -= 1
    return nc


def init_params(key):
    """Deterministic synthetic parameters (PyTorch-style shapes)."""
    ks = jax.random.split(key, 2 * NUM_LAYERS + 4)
    w0 = jax.random.normal(ks[0], (IN_FEATS, HIDDEN), jnp.float32) * 0.1
    b0 = jax.random.normal(ks[1], (HIDDEN,), jnp.float32) * 0.01
    ws = jnp.stack([jax.random.normal(ks[2 * l], (HIDDEN, HIDDEN), jnp.float32) * 0.1
                    for l in range(1, NUM_LAYERS)])                 # [L-1, H, H]
    bs = jnp.stack([jax.random.normal(ks[2 * l + 1], (HIDDEN,), jnp.float32) * 0.01
                    for l in range(1, NUM_LAYERS)])                 # [L-1, H]
    fc1_w = jax.random.normal(ks[-4], (HIDDEN, DENSE_UNITS), jnp.float32) * 0.1
    fc1_b = jax.random.normal(ks[-3], (DENSE_UNITS,), jnp.float32) * 0.01
    fc2_w = jax.random.normal(ks[-2], (DENSE_UNITS, 1), jnp.float32) * 0.1
    fc2_b = jax.random.normal(ks[-1], (1,), jnp.float32) * 0.01
    return w0, b0, ws, bs, fc1_w, fc1_b, fc2_w, fc2_b


def pack_params(params, num_layers):
    """Consolidate the 8 parameter tensors into one weight stack + one column slab."""
    w0, b0, ws, bs, fc1_w, fc1_b, fc2_w, fc2_b = params
    H, D, L = HIDDEN, DENSE_UNITS, num_layers
    wT = jnp.zeros((L + 1, H, H), jnp.float32)
    wT = wT.at[0, :, :IN_FEATS].set(w0.T)           # layer 0: [H, 3] in cols 0..2
    for l in range(1, L):
        wT = wT.at[l].set(ws[l - 1].T)
    wT = wT.at[L, :D, :].set(fc1_w.T)               # fc1: [D, H] in rows 0..D-1
    cols = jnp.zeros((H, L + 3), jnp.float32)
    cols = cols.at[:, 0].set(b0)
    for l in range(1, L):
        cols = cols.at[:, l].set(bs[l - 1])
    cols = cols.at[:D, L].set(fc1_b)                # fc1 bias column
    cols = cols.at[:D, L + 1].set(fc2_w[:, 0])      # fc2 weight column
    cols = cols.at[0, L + 2].set(fc2_b[0])          # fc2 bias scalar
    return wT, cols


@functools.partial(jax.jit, static_argnames=("num_graphs", "num_chunks"))
def gcn_forward_batched(x_b, edge_index_b, batch_b, params,
                        num_graphs=NUM_GRAPHS, num_chunks=None):
    """x_b: [B, N, 3]; edge_index_b: [B, 2, E]; batch_b: [B, N].  -> [B, G, 1]."""
    B, n, _ = x_b.shape
    G, H, L = num_graphs, HIDDEN, NUM_LAYERS
    C = num_chunks if num_chunks is not None else _num_chunks_for_device(B)
    assert B % C == 0
    Bc = B // C            # graph-batches per chunk
    Mc = Bc * n            # nodes per chunk
    GBc = Bc * G           # graphs per chunk

    # vectorized glue: one batched scatter for all adjacencies, no Python unroll
    adj_b = jax.vmap(lambda ei: build_normalized_adjacency(ei, n))(edge_index_b)   # [B,N,N]
    poolT_b = jax.vmap(lambda bv: build_mean_pool_matrix_T(bv, G))(batch_b)        # [B,N,G]

    # block-diagonal per chunk (graphs in different graph-batches never interact)
    adj_cd = jax.vmap(_block_diag)(adj_b.reshape(C, Bc, n, n))       # [C, Mc, Mc]
    adjT_cd = jnp.swapaxes(adj_cd, -1, -2)
    poolT_cd = jax.vmap(_block_diag)(poolT_b.reshape(C, Bc, n, G))   # [C, Mc, GBc]

    # node features: pad 3 -> H (matches zero cols of layer-0 weight), transpose
    x_pad = jnp.zeros((B, n, H), jnp.float32).at[:, :, :IN_FEATS].set(
        x_b.astype(jnp.float32))
    xT_cd = jnp.swapaxes(x_pad.reshape(C, Mc, H), -1, -2)            # [C, H, Mc]

    wT_all, cols = pack_params(params, L)

    flops = C * (L * (2 * H * H * Mc + 2 * H * Mc * Mc)
                 + 2 * H * Mc * GBc + 2 * H * H * GBc + 2 * H * GBc)
    bytes_accessed = 4 * (adjT_cd.size + xT_cd.size + poolT_cd.size
                          + wT_all.size + cols.size + C * GBc)

    kernel = functools.partial(gcn_kernel, num_layers=L)
    grid_spec = pltpu.PrefetchScalarGridSpec(
        num_scalar_prefetch=0,
        grid=(C,),
        in_specs=[
            pl.BlockSpec((1, Mc, Mc), lambda c: (c, 0, 0)),       # A_hat^T (block-diag)
            pl.BlockSpec((1, H, Mc), lambda c: (c, 0, 0)),        # x^T
            pl.BlockSpec((1, Mc, GBc), lambda c: (c, 0, 0)),      # pool^T
            pl.BlockSpec((L + 1, H, H), lambda c: (0, 0, 0)),     # weight stack
            pl.BlockSpec((H, L + 3), lambda c: (0, 0)),           # bias/head slab
        ],
        out_specs=pl.BlockSpec((1, 1, GBc), lambda c: (c, 0, 0)),
    )

    out = pl.pallas_call(
        kernel,
        out_shape=jax.ShapeDtypeStruct((C, 1, GBc), jnp.float32),
        grid_spec=grid_spec,
        compiler_params=pltpu.CompilerParams(
            dimension_semantics=("parallel",)),
        cost_estimate=pl.CostEstimate(flops=flops, transcendentals=0,
                                      bytes_accessed=bytes_accessed),
    )(adjT_cd, xT_cd, poolT_cd, wT_all, cols)
    return out.reshape(B, G, 1)


def gcn_reference(x_b, adj_b, poolT_b, params, num_layers=NUM_LAYERS):
    """Pure-JAX reference (same math, standard orientation) for correctness."""
    w0, b0, ws, bs, fc1_w, fc1_b, fc2_w, fc2_b = params

    def one(x, adj, poolT):
        h = jnp.maximum(adj @ (x @ w0) + b0[None, :], 0.0)
        for l in range(num_layers - 1):
            h = jnp.maximum(adj @ (h @ ws[l]) + bs[l][None, :], 0.0)
        pooled = poolT.T @ h                                   # [G, H]
        z = jnp.maximum(pooled @ fc1_w + fc1_b[None, :], 0.0)
        return z @ fc2_w + fc2_b[None, :]                      # [G, 1]

    return jax.vmap(one)(x_b, adj_b, poolT_b)


# --------------------------------- main --------------------------------------
if __name__ == "__main__":
    key = jax.random.PRNGKey(0)
    k_x, k_p = jax.random.split(key)

    B = NUM_BATCHES
    x_b = jax.random.normal(k_x, (B, NUM_NODES, IN_FEATS), jnp.float32)

    # Each graph-batch: NUM_GRAPHS ring graphs of NUM_NODES/NUM_GRAPHS nodes.
    nodes_per_graph = NUM_NODES // NUM_GRAPHS
    edges = []
    for g in range(NUM_GRAPHS):
        base = g * nodes_per_graph
        for i in range(nodes_per_graph):
            a = base + i
            b = base + (i + 1) % nodes_per_graph
            edges.append((a, b))
            edges.append((b, a))
    edge_index = jnp.array(edges, dtype=jnp.int32).T                   # [2, E]
    edge_index_b = jnp.tile(edge_index[None], (B, 1, 1))               # [B, 2, E]
    batch_vec = jnp.repeat(jnp.arange(NUM_GRAPHS, dtype=jnp.int32), nodes_per_graph)
    batch_b = jnp.tile(batch_vec[None, :], (B, 1))                     # [B, N]

    params = init_params(k_p)
    out = gcn_forward_batched(x_b, edge_index_b, batch_b, params)
    jax.block_until_ready(out)
    assert out.shape == (B, NUM_GRAPHS, 1)

    # Correctness check against the pure-JAX reference.
    adj_b = jax.vmap(lambda ei: build_normalized_adjacency(ei, NUM_NODES))(edge_index_b)
    poolT_b = jax.vmap(lambda bv: build_mean_pool_matrix_T(bv, NUM_GRAPHS))(batch_b)
    with jax.default_matmul_precision("float32"):
        ref = gcn_reference(x_b, adj_b, poolT_b, params)
    assert jnp.allclose(out, ref, rtol=1e-2, atol=1e-3), (out, ref)

    print("KERNEL_OK")
</pallas_src>

<mosaic_0001>
module attributes {stable_mosaic.version = 11 : i64} {
  func.func private @main(%arg0: i32) attributes {dimension_semantics = [#tpu.dimension_semantics<core_parallel>], iteration_bounds = array<i64: 2>, tpu.core_type = #tpu.core_type<sc_scalar_subcore>, window_params = []} {
    return
  }
}

module attributes {stable_mosaic.version = 11 : i64} {
  func.func private @main(%arg0: i32) attributes {dimension_semantics = [#tpu.dimension_semantics<core_parallel>], iteration_bounds = array<i64: 2>, tpu.core_type = #tpu.core_type<sc_scalar_subcore>, window_params = []} {
    return
  }
}

module attributes {stable_mosaic.version = 11 : i64} {
  func.func @gcn_kernel(%arg0: i32, %arg1: memref<1x64x64xf32, #tpu.memory_space<vmem>>, %arg2: memref<1x32x64xf32, #tpu.memory_space<vmem>>, %arg3: memref<1x64x8xf32, #tpu.memory_space<vmem>>, %arg4: memref<3x32x32xf32, #tpu.memory_space<vmem>>, %arg5: memref<32x5xf32, #tpu.memory_space<vmem>>, %arg6: memref<1x1x8xf32, #tpu.memory_space<vmem>>) attributes {dimension_semantics = [#tpu.dimension_semantics<parallel>], iteration_bounds = array<i64: 1>, scalar_prefetch = 0 : i64, scratch_operands = 0 : i64, tpu.core_type = #tpu.core_type<tc>, window_params = [{transform_indices = @transform_0, window_bounds = array<i64: 1, 64, 64>}, {transform_indices = @transform_1, window_bounds = array<i64: 1, 32, 64>}, {transform_indices = @transform_2, window_bounds = array<i64: 1, 64, 8>}, {pipeline_mode = #tpu.pipeline_mode<synchronous>, transform_indices = @transform_3, window_bounds = array<i64: 3, 32, 32>}, {pipeline_mode = #tpu.pipeline_mode<synchronous>, transform_indices = @transform_4, window_bounds = array<i64: 32, 5>}, {transform_indices = @transform_5, window_bounds = array<i64: 1, 1, 8>}]} {
    %c0 = arith.constant 0 : index
    %c0_0 = arith.constant 0 : index
    %c0_1 = arith.constant 0 : index
    %0 = vector.load %arg1[%c0, %c0_0, %c0_1] : memref<1x64x64xf32, #tpu.memory_space<vmem>>, vector<1x64x64xf32>
    %1 = vector.shape_cast %0 : vector<1x64x64xf32> to vector<64x64xf32>
    %c0_2 = arith.constant 0 : index
    %c0_3 = arith.constant 0 : index
    %c0_4 = arith.constant 0 : index
    %2 = vector.load %arg2[%c0_2, %c0_3, %c0_4] : memref<1x32x64xf32, #tpu.memory_space<vmem>>, vector<1x32x64xf32>
    %3 = vector.shape_cast %2 : vector<1x32x64xf32> to vector<32x64xf32>
    %c0_5 = arith.constant 0 : index
    %c0_6 = arith.constant 0 : index
    %4 = vector.load %arg5[%c0_5, %c0_6] : memref<32x5xf32, #tpu.memory_space<vmem>>, vector<32x5xf32>
    %c0_7 = arith.constant 0 : index
    %c0_8 = arith.constant 0 : index
    %c0_9 = arith.constant 0 : index
    %5 = vector.load %arg4[%c0_7, %c0_8, %c0_9] : memref<3x32x32xf32, #tpu.memory_space<vmem>>, vector<1x32x32xf32>
    %6 = vector.shape_cast %5 : vector<1x32x32xf32> to vector<32x32xf32>
    %cst = arith.constant dense<0.000000e+00> : vector<32x64xf32>
    %7 = tpu.matmul %6, %3, %cst {dimension_numbers = #tpu.dot_dimension_numbers<[1], [0], [0], [1], [0, 0, 1, 1], [], []>} : vector<32x32xf32>, vector<32x64xf32>, vector<32x64xf32> -> vector<32x64xf32>
    %cst_10 = arith.constant dense<0.000000e+00> : vector<32x64xf32>
    %8 = tpu.matmul %7, %1, %cst_10 {dimension_numbers = #tpu.dot_dimension_numbers<[1], [0], [0], [1], [0, 0, 1, 1], [], []>} : vector<32x64xf32>, vector<64x64xf32>, vector<32x64xf32> -> vector<32x64xf32>
    %9 = vector.extract_strided_slice %4 {offsets = [0, 0], sizes = [32, 1], strides = [1, 1]} : vector<32x5xf32> to vector<32x1xf32>
    %10 = vector.broadcast %9 : vector<32x1xf32> to vector<32x64xf32>
    %11 = arith.addf %8, %10 : vector<32x64xf32>
    %cst_11 = arith.constant 0.000000e+00 : f32
    %12 = vector.broadcast %cst_11 : f32 to vector<32x64xf32>
    %13 = arith.maximumf %11, %12 : vector<32x64xf32>
    %c1 = arith.constant 1 : index
    %c0_12 = arith.constant 0 : index
    %c0_13 = arith.constant 0 : index
    %14 = vector.load %arg4[%c1, %c0_12, %c0_13] : memref<3x32x32xf32, #tpu.memory_space<vmem>>, vector<1x32x32xf32>
    %15 = vector.shape_cast %14 : vector<1x32x32xf32> to vector<32x32xf32>
    %cst_14 = arith.constant dense<0.000000e+00> : vector<32x64xf32>
    %16 = tpu.matmul %15, %13, %cst_14 {dimension_numbers = #tpu.dot_dimension_numbers<[1], [0], [0], [1], [0, 0, 1, 1], [], []>} : vector<32x32xf32>, vector<32x64xf32>, vector<32x64xf32> -> vector<32x64xf32>
    %cst_15 = arith.constant dense<0.000000e+00> : vector<32x64xf32>
    %17 = tpu.matmul %16, %1, %cst_15 {dimension_numbers = #tpu.dot_dimension_numbers<[1], [0], [0], [1], [0, 0, 1, 1], [], []>} : vector<32x64xf32>, vector<64x64xf32>, vector<32x64xf32> -> vector<32x64xf32>
    %18 = vector.extract_strided_slice %4 {offsets = [0, 1], sizes = [32, 1], strides = [1, 1]} : vector<32x5xf32> to vector<32x1xf32>
    %19 = vector.broadcast %18 : vector<32x1xf32> to vector<32x64xf32>
    %20 = arith.addf %17, %19 : vector<32x64xf32>
    %cst_16 = arith.constant 0.000000e+00 : f32
    %21 = vector.broadcast %cst_16 : f32 to vector<32x64xf32>
    %22 = arith.maximumf %20, %21 : vector<32x64xf32>
    %c0_17 = arith.constant 0 : index
    %c0_18 = arith.constant 0 : index
    %c0_19 = arith.constant 0 : index
    %23 = vector.load %arg3[%c0_17, %c0_18, %c0_19] : memref<1x64x8xf32, #tpu.memory_space<vmem>>, vector<1x64x8xf32>
    %24 = vector.shape_cast %23 : vector<1x64x8xf32> to vector<64x8xf32>
    %cst_20 = arith.constant dense<0.000000e+00> : vector<32x8xf32>
    %25 = tpu.matmul %22, %24, %cst_20 {dimension_numbers = #tpu.dot_dimension_numbers<[1], [0], [0], [1], [0, 0, 1, 1], [], []>} : vector<32x64xf32>, vector<64x8xf32>, vector<32x8xf32> -> vector<32x8xf32>
    %c2 = arith.constant 2 : index
    %c0_21 = arith.constant 0 : index
    %c0_22 = arith.constant 0 : index
    %26 = vector.load %arg4[%c2, %c0_21, %c0_22] : memref<3x32x32xf32, #tpu.memory_space<vmem>>, vector<1x32x32xf32>
    %27 = vector.shape_cast %26 : vector<1x32x32xf32> to vector<32x32xf32>
    %cst_23 = arith.constant dense<0.000000e+00> : vector<32x8xf32>
    %28 = tpu.matmul %27, %25, %cst_23 {dimension_numbers = #tpu.dot_dimension_numbers<[1], [0], [0], [1], [0, 0, 1, 1], [], []>} : vector<32x32xf32>, vector<32x8xf32>, vector<32x8xf32> -> vector<32x8xf32>
    %29 = vector.extract_strided_slice %4 {offsets = [0, 2], sizes = [32, 1], strides = [1, 1]} : vector<32x5xf32> to vector<32x1xf32>
    %30 = vector.broadcast %29 : vector<32x1xf32> to vector<32x8xf32>
    %31 = arith.addf %28, %30 : vector<32x8xf32>
    %cst_24 = arith.constant 0.000000e+00 : f32
    %32 = vector.broadcast %cst_24 : f32 to vector<32x8xf32>
    %33 = arith.maximumf %31, %32 : vector<32x8xf32>
    %34 = vector.extract_strided_slice %4 {offsets = [0, 3], sizes = [32, 1], strides = [1, 1]} : vector<32x5xf32> to vector<32x1xf32>
    %35 = vector.broadcast %34 : vector<32x1xf32> to vector<32x8xf32>
    %36 = arith.mulf %33, %35 : vector<32x8xf32>
    %cst_25 = arith.constant dense<0.000000e+00> : vector<8xf32>
    %37 = vector.multi_reduction <add>, %36, %cst_25 [0] : vector<32x8xf32> to vector<8xf32>
    %38 = vector.shape_cast %37 : vector<8xf32> to vector<1x8xf32>
    %39 = vector.extract_strided_slice %4 {offsets = [0, 4], sizes = [1, 1], strides = [1, 1]} : vector<32x5xf32> to vector<1x1xf32>
    %40 = vector.broadcast %39 : vector<1x1xf32> to vector<1x8xf32>
    %41 = arith.addf %38, %40 : vector<1x8xf32>
    %c0_26 = arith.constant 0 : index
    %c0_27 = arith.constant 0 : index
    %c0_28 = arith.constant 0 : index
    %42 = vector.load %arg6[%c0_26, %c0_27, %c0_28] : memref<1x1x8xf32, #tpu.memory_space<vmem>>, vector<1x1x8xf32>
    %43 = vector.shape_cast %42 : vector<1x1x8xf32> to vector<1x8xf32>
    %44 = vector.shape_cast %41 : vector<1x8xf32> to vector<1x1x8xf32>
    tpu.vector_store %arg6[%c0_26, %c0_27, %c0_28], %44 {strides = array<i32>} : memref<1x1x8xf32, #tpu.memory_space<vmem>>, vector<1x1x8xf32>,
    return
  }
  func.func @transform_0(%arg0: i32) -> (i32, i32, i32) {
    %c0_i32 = arith.constant 0 : i32
    %c0_i32_0 = arith.constant 0 : i32
    %c0_i32_1 = arith.constant 0 : i32
    return %arg0, %c0_i32, %c0_i32_0 : i32, i32, i32
  }
  func.func @transform_1(%arg0: i32) -> (i32, i32, i32) {
    %c0_i32 = arith.constant 0 : i32
    %c0_i32_0 = arith.constant 0 : i32
    %c0_i32_1 = arith.constant 0 : i32
    return %arg0, %c0_i32, %c0_i32_0 : i32, i32, i32
  }
  func.func @transform_2(%arg0: i32) -> (i32, i32, i32) {
    %c0_i32 = arith.constant 0 : i32
    %c0_i32_0 = arith.constant 0 : i32
    %c0_i32_1 = arith.constant 0 : i32
    return %arg0, %c0_i32, %c0_i32_0 : i32, i32, i32
  }
  func.func @transform_3(%arg0: i32) -> (i32, i32, i32) {
    %c0_i32 = arith.constant 0 : i32
    %c0_i32_0 = arith.constant 0 : i32
    %c0_i32_1 = arith.constant 0 : i32
    %c0_i32_2 = arith.constant 0 : i32
    return %c0_i32, %c0_i32_0, %c0_i32_1 : i32, i32, i32
  }
  func.func @transform_4(%arg0: i32) -> (i32, i32) {
    %c0_i32 = arith.constant 0 : i32
    %c0_i32_0 = arith.constant 0 : i32
    %c0_i32_1 = arith.constant 0 : i32
    return %c0_i32, %c0_i32_0 : i32, i32
  }
  func.func @transform_5(%arg0: i32) -> (i32, i32, i32) {
    %c0_i32 = arith.constant 0 : i32
    %c0_i32_0 = arith.constant 0 : i32
    %c0_i32_1 = arith.constant 0 : i32
    return %arg0, %c0_i32, %c0_i32_0 : i32, i32, i32
  }
}

</mosaic_0001>

<llo_original>
// kernel: gcn_forward_batched.1
$region0: #{gcn_forward_batched.1}
  #allocation0 [shape = 'u32[]', space=smem, size = 0x4, offset = 0x4, fixed_abs, tag = 'smem constant byte address 0x4 - core index']
  #allocation1 [shape = 'u32[144,128]{1,0:T(1,128)}', space=vmem, size = 0x12000, scoped, tag = 'internal scratch']
  %s0 = inlined_call_operand.vmem [shape: f32[1,64,64], index: 0, kind: input, shape index: {}]
  %s1 = inlined_call_operand.vmem [shape: f32[1,32,64], index: 1, kind: input, shape index: {}]
  %s2 = inlined_call_operand.vmem [shape: f32[1,64,8], index: 2, kind: input, shape index: {}]
  %s3 = inlined_call_operand.vmem [shape: f32[3,32,32], index: 3, kind: input, shape index: {}]
  %s4 = inlined_call_operand.vmem [shape: f32[32,5], index: 4, kind: input, shape index: {}]
  %s5 = inlined_call_operand.vmem [shape: f32[1,1,8], index: 5, kind: output, shape index: {}]
  %s6 = sld [smem:[#allocation0]]
  $region30: #{gcn_forward_batched.1} parent=0
    _
  %s8 = ssub.s32 1, %s6
  %s9 = scalar_select 0, %s8, %s6
  // Predicated region
  $region2: #{gcn_forward_batched.1} parent=0 // pred_check
    _
  $region3: #{gcn_forward_batched.1} parent=0 // pred_check_branch
    %11 = sbr.rel (0) target = $region5
  $region4: #{gcn_forward_batched.1} parent=0 // pred_region
    _
  $region5: #{gcn_forward_batched.1} parent=0 // pred_fallthru
    _
  // Predicated region
  $region6: #{gcn_forward_batched.1} parent=0 // pred_check
    _
  $region7: #{gcn_forward_batched.1} parent=0 // pred_check_branch
    %13 = sbr.rel (0) target = $region9
  $region8: #{gcn_forward_batched.1} parent=0 // pred_region
    _
  $region9: #{gcn_forward_batched.1} parent=0 // pred_fallthru
    _
  // Predicated region
  $region10: #{gcn_forward_batched.1} parent=0 // pred_check
    _
  $region11: #{gcn_forward_batched.1} parent=0 // pred_check_branch
    %15 = sbr.rel (0) target = $region13
  $region12: #{gcn_forward_batched.1} parent=0 // pred_region
    _
  $region13: #{gcn_forward_batched.1} parent=0 // pred_fallthru
    _
  // Predicated region
  $region14: #{gcn_forward_batched.1} parent=0 // pred_check
    _
  $region15: #{gcn_forward_batched.1} parent=0 // pred_check_branch
    %17 = sbr.rel (0) target = $region17
  $region16: #{gcn_forward_batched.1} parent=0 // pred_region
    _
  $region17: #{gcn_forward_batched.1} parent=0 // pred_fallthru
    _
  // Predicated region
  $region18: #{gcn_forward_batched.1} parent=0 // pred_check
    _
  $region19: #{gcn_forward_batched.1} parent=0 // pred_check_branch
    %19 = sbr.rel (0) target = $region21
  $region20: #{gcn_forward_batched.1} parent=0 // pred_region
    _
  $region21: #{gcn_forward_batched.1} parent=0 // pred_fallthru
    _
  %v20 = vld [vmem:[%s0] sm:$0xff]
  %v21 = vld [vmem:[%s0 + $0x8] sm:$0xff]
  %v22 = vld [vmem:[%s0 + $0x10] sm:$0xff]
  %v23 = vld [vmem:[%s0 + $0x18] sm:$0xff]
  %v24 = vld [vmem:[%s0 + $0x20] sm:$0xff]
  %v25 = vld [vmem:[%s0 + $0x28] sm:$0xff]
  %v26 = vld [vmem:[%s0 + $0x30] sm:$0xff]
  %v27 = vld [vmem:[%s0 + $0x38] sm:$0xff]
  %v28 = vld [vmem:[%s1] sm:$0xff]
  %v29 = vld [vmem:[%s1 + $0x8] sm:$0xff]
  %v30 = vld [vmem:[%s1 + $0x10] sm:$0xff]
  %v31 = vld [vmem:[%s1 + $0x18] sm:$0xff]
  %v32 = vld [vmem:[%s4] sm:$0xff]
  %v33 = vld [vmem:[%s4 + $0x8] sm:$0xff]
  %v34 = vld [vmem:[%s4 + $0x10] sm:$0xff]
  %v35 = vld [vmem:[%s4 + $0x18] sm:$0xff]
  %v36 = vld [vmem:[%s3] sm:$0xff]
  %v37 = vld [vmem:[%s3 + $0x8] sm:$0xff]
  %v38 = vld [vmem:[%s3 + $0x10] sm:$0xff]
  %v39 = vld [vmem:[%s3 + $0x18] sm:$0xff]
  %vm40 = vcmask 261120
  %v42 = vsel %vm40, %v36, 0
  %v45 = vsel %vm40, %v37, 0
  %v48 = vsel %vm40, %v38, 0
  %v51 = vsel %vm40, %v39, 0
  %53 = vmatprep.subr.mxu0 0.0
  %54 = vmatpush1.msra.mxu0 %v28
  %55 = vmatprep.subr.mxu0 0.0
  %56 = vmatpush1.msra.mxu0 %v29
  %57 = vmatprep.subr.mxu0 0.0
  %58 = vmatpush1.msra.mxu0 %v30
  %59 = vmatprep.subr.mxu0 0.0
  %60 = vmatpush1.msra.mxu0 %v31
  %61 = vmatprep.subr.mxu0 0.0
  %62 = vmatpush1.msra.mxu0 0.0
  %63 = vmatprep.subr.mxu0 0.0
  %64 = vmatpush1.msra.mxu0 0.0
  %65 = vmatprep.subr.mxu0 0.0
  %66 = vmatpush1.msra.mxu0 0.0
  %67 = vmatprep.subr.mxu0 0.0
  %68 = vmatpush1.msra.mxu0 0.0
  %69 = vmatprep.subr.mxu0 0.0
  %70 = vmatpush1.msra.mxu0 0.0
  %71 = vmatprep.subr.mxu0 0.0
  %72 = vmatpush1.msra.mxu0 0.0
  %73 = vmatprep.subr.mxu0 0.0
  %74 = vmatpush1.msra.mxu0 0.0
  %75 = vmatprep.subr.mxu0 0.0
  %76 = vmatpush1.msra.mxu0 0.0
  %77 = vmatprep.subr.mxu0 0.0
  %78 = vmatpush1.msra.mxu0 0.0
  %79 = vmatprep.subr.mxu0 0.0
  %80 = vmatpush1.msra.mxu0 0.0
  %81 = vmatprep.subr.mxu0 0.0
  %82 = vmatpush1.msra.mxu0 0.0
  %83 = vmatprep.subr.mxu0 0.0
  %84 = vmatpush1.msra.mxu0 0.0
  %85 = vmatprep.subr.mxu0 0.0
  %86 = vmatpush1.msra.mxu0 0.0
  %87 = vmatprep.subr.mxu0 0.0
  %88 = vmatpush1.msra.mxu0 0.0
  %89 = vmatprep.subr.mxu0 0.0
  %90 = vmatpush1.msra.mxu0 0.0
  %91 = vmatprep.subr.mxu0 0.0
  %92 = vmatpush1.msra.mxu0 0.0
  %93 = vmatprep.subr.mxu0 0.0
  %94 = vmatpush1.msra.mxu0 0.0
  %95 = vmatprep.subr.mxu0 0.0
  %96 = vmatpush1.msra.mxu0 0.0
  %97 = vmatprep.subr.mxu0 0.0
  %98 = vmatpush1.msra.mxu0 0.0
  %99 = vmatprep.subr.mxu0 0.0
  %100 = vmatpush1.msra.mxu0 0.0
  %101 = vmatprep.subr.mxu0 0.0
  %102 = vmatpush1.msra.mxu0 0.0
  %103 = vmatprep.subr.mxu0 0.0
  %104 = vmatpush1.msra.mxu0 0.0
  %105 = vmatprep.subr.mxu0 0.0
  %106 = vmatpush1.msra.mxu0 0.0
  %107 = vmatprep.subr.mxu0 0.0
  %108 = vmatpush1.msra.mxu0 0.0
  %109 = vmatprep.subr.mxu0 0.0
  %110 = vmatpush1.msra.mxu0 0.0
  %111 = vmatprep.subr.mxu0 0.0
  %112 = vmatpush1.msra.mxu0 0.0
  %113 = vmatprep.subr.mxu0 0.0
  %114 = vmatpush1.msra.mxu0 0.0
  %115 = vmatprep.subr.mxu0 0.0
  %116 = vmatpush1.msra.mxu0 0.0
  %117 = vmatprep.mubr.f32.mxu0 0.0
  %118 = vmatmul.mubr.f32.gmra.mrb[0].mxu0 %v42
  %v119 = vpop.f32.mrb[0].mxu0
  %v120 = vadd.f32 0.0, %v119
  %v121 = vpop.f32.mrb[0].mxu0
  %122 = vmatprep.mubr.f32.mxu0 0.0
  %123 = vmatmul.mubr.f32.gmra.mrb[0].mxu0 %v45
  %v124 = vpop.f32.mrb[0].mxu0
  %v125 = vadd.f32 0.0, %v124
  %v126 = vpop.f32.mrb[0].mxu0
  %127 = vmatprep.mubr.f32.mxu0 0.0
  %128 = vmatmul.mubr.f32.gmra.mrb[0].mxu0 %v48
  %v129 = vpop.f32.mrb[0].mxu0
  %v130 = vadd.f32 0.0, %v129
  %v131 = vpop.f32.mrb[0].mxu0
  %132 = vmatprep.mubr.f32.mxu0 0.0
  %133 = vmatmul.mubr.f32.gmra.mrb[0].mxu0 %v51
  %v134 = vpop.f32.mrb[0].mxu0
  %v135 = vadd.f32 0.0, %v134
  %v136 = vpop.f32.mrb[0].mxu0
  %137 = vdwg.mxu0
  %139 = vset.pattern.permute.xlu0 0
  %140 = vperm.xlu0 %139, %v32
  %v141 = vpop.permute.xlu0 %140
  %144 = vset.pattern.permute.xlu0 0
  %145 = vperm.xlu0 %144, %v33
  %v146 = vpop.permute.xlu0 %145
  %149 = vset.pattern.permute.xlu0 0
  %150 = vperm.xlu0 %149, %v34
  %v151 = vpop.permute.xlu0 %150
  %154 = vset.pattern.permute.xlu0 0
  %155 = vperm.xlu0 %154, %v35
  %v156 = vpop.permute.xlu0 %155
  %vm158 = vcmask 523264
  %v160 = vsel %vm158, %v120, 0
  %v163 = vsel %vm158, %v125, 0
  %v166 = vsel %vm158, %v130, 0
  %v169 = vsel %vm158, %v135, 0
  %171 = vmatprep.subr.mxu0 0.0
  %172 = vmatpush1.msra.mxu0 %v20
  %173 = vmatprep.subr.mxu0 0.0
  %174 = vmatpush1.msra.mxu0 %v21
  %175 = vmatprep.subr.mxu0 0.0
  %176 = vmatpush1.msra.mxu0 %v22
  %177 = vmatprep.subr.mxu0 0.0
  %178 = vmatpush1.msra.mxu0 %v23
  %179 = vmatprep.subr.mxu0 0.0
  %180 = vmatpush1.msra.mxu0 %v24
  %181 = vmatprep.subr.mxu0 0.0
  %182 = vmatpush1.msra.mxu0 %v25
  %183 = vmatprep.subr.mxu0 0.0
  %184 = vmatpush1.msra.mxu0 %v26
  %185 = vmatprep.subr.mxu0 0.0
  %186 = vmatpush1.msra.mxu0 %v27
  %187 = vmatprep.subr.mxu0 0.0
  %188 = vmatpush1.msra.mxu0 0.0
  %189 = vmatprep.subr.mxu0 0.0
  %190 = vmatpush1.msra.mxu0 0.0
  %191 = vmatprep.subr.mxu0 0.0
  %192 = vmatpush1.msra.mxu0 0.0
  %193 = vmatprep.subr.mxu0 0.0
  %194 = vmatpush1.msra.mxu0 0.0
  %195 = vmatprep.subr.mxu0 0.0
  %196 = vmatpush1.msra.mxu0 0.0
  %197 = vmatprep.subr.mxu0 0.0
  %198 = vmatpush1.msra.mxu0 0.0
  %199 = vmatprep.subr.mxu0 0.0
  %200 = vmatpush1.msra.mxu0 0.0
  %201 = vmatprep.subr.mxu0 0.0
  %202 = vmatpush1.msra.mxu0 0.0
  %203 = vmatprep.subr.mxu0 0.0
  %204 = vmatpush1.msra.mxu0 0.0
  %205 = vmatprep.subr.mxu0 0.0
  %206 = vmatpush1.msra.mxu0 0.0
  %207 = vmatprep.subr.mxu0 0.0
  %208 = vmatpush1.msra.mxu0 0.0
  %209 = vmatprep.subr.mxu0 0.0
  %210 = vmatpush1.msra.mxu0 0.0
  %211 = vmatprep.subr.mxu0 0.0
  %212 = vmatpush1.msra.mxu0 0.0
  %213 = vmatprep.subr.mxu0 0.0
  %214 = vmatpush1.msra.mxu0 0.0
  %215 = vmatprep.subr.mxu0 0.0
  %216 = vmatpush1.msra.mxu0 0.0
  %217 = vmatprep.subr.mxu0 0.0
  %218 = vmatpush1.msra.mxu0 0.0
  %219 = vmatprep.subr.mxu0 0.0
  %220 = vmatpush1.msra.mxu0 0.0
  %221 = vmatprep.subr.mxu0 0.0
  %222 = vmatpush1.msra.mxu0 0.0
  %223 = vmatprep.subr.mxu0 0.0
  %224 = vmatpush1.msra.mxu0 0.0
  %225 = vmatprep.subr.mxu0 0.0
  %226 = vmatpush1.msra.mxu0 0.0
  %227 = vmatprep.subr.mxu0 0.0
  %228 = vmatpush1.msra.mxu0 0.0
  %229 = vmatprep.subr.mxu0 0.0
  %230 = vmatpush1.msra.mxu0 0.0
  %231 = vmatprep.subr.mxu0 0.0
  %232 = vmatpush1.msra.mxu0 0.0
  %233 = vmatprep.subr.mxu0 0.0
  %234 = vmatpush1.msra.mxu0 0.0
  %235 = vmatprep.mubr.f32.mxu0 0.0
  %236 = vmatmul.mubr.f32.gmra.mrb[0].mxu0 %v160
  %v237 = vpop.f32.mrb[0].mxu0
  %v238 = vadd.f32 %v141, %v237
  %v239 = vpop.f32.mrb[0].mxu0
  %240 = vmatprep.mubr.f32.mxu0 0.0
  %241 = vmatmul.mubr.f32.gmra.mrb[0].mxu0 %v163
  %v242 = vpop.f32.mrb[0].mxu0
  %v243 = vadd.f32 %v146, %v242
  %v244 = vpop.f32.mrb[0].mxu0
  %245 = vmatprep.mubr.f32.mxu0 0.0
  %246 = vmatmul.mubr.f32.gmra.mrb[0].mxu0 %v166
  %v247 = vpop.f32.mrb[0].mxu0
  %v248 = vadd.f32 %v151, %v247
  %v249 = vpop.f32.mrb[0].mxu0
  %250 = vmatprep.mubr.f32.mxu0 0.0
  %251 = vmatmul.mubr.f32.gmra.mrb[0].mxu0 %v169
  %v252 = vpop.f32.mrb[0].mxu0
  %v253 = vadd.f32 %v156, %v252
  %v254 = vpop.f32.mrb[0].mxu0
  %255 = vdwg.mxu0
  %v256 = vmax.f32 %v238, 0.0
  %v257 = vmax.f32 %v243, 0.0
  %v258 = vmax.f32 %v248, 0.0
  %v259 = vmax.f32 %v253, 0.0
  %s260 = scalar_lea.vmem %s3, 32
  %v261 = vld [vmem:[%s260] sm:$0xff]
  %v262 = vld [vmem:[%s260 + $0x8] sm:$0xff]
  %v263 = vld [vmem:[%s260 + $0x10] sm:$0xff]
  %v264 = vld [vmem:[%s260 + $0x18] sm:$0xff]
  %v266 = vsel %vm40, %v261, 0
  %v269 = vsel %vm40, %v262, 0
  %v272 = vsel %vm40, %v263, 0
  %v275 = vsel %vm40, %v264, 0
  %277 = vmatprep.subr.mxu0 0.0
  %278 = vmatpush1.msra.mxu0 %v256
  %279 = vmatprep.subr.mxu0 0.0
  %280 = vmatpush1.msra.mxu0 %v257
  %281 = vmatprep.subr.mxu0 0.0
  %282 = vmatpush1.msra.mxu0 %v258
  %283 = vmatprep.subr.mxu0 0.0
  %284 = vmatpush1.msra.mxu0 %v259
  %285 = vmatprep.subr.mxu0 0.0
  %286 = vmatpush1.msra.mxu0 0.0
  %287 = vmatprep.subr.mxu0 0.0
  %288 = vmatpush1.msra.mxu0 0.0
  %289 = vmatprep.subr.mxu0 0.0
  %290 = vmatpush1.msra.mxu0 0.0
  %291 = vmatprep.subr.mxu0 0.0
  %292 = vmatpush1.msra.mxu0 0.0
  %293 = vmatprep.subr.mxu0 0.0
  %294 = vmatpush1.msra.mxu0 0.0
  %295 = vmatprep.subr.mxu0 0.0
  %296 = vmatpush1.msra.mxu0 0.0
  %297 = vmatprep.subr.mxu0 0.0
  %298 = vmatpush1.msra.mxu0 0.0
  %299 = vmatprep.subr.mxu0 0.0
  %300 = vmatpush1.msra.mxu0 0.0
  %301 = vmatprep.subr.mxu0 0.0
  %302 = vmatpush1.msra.mxu0 0.0
  %303 = vmatprep.subr.mxu0 0.0
  %304 = vmatpush1.msra.mxu0 0.0
  %305 = vmatprep.subr.mxu0 0.0
  %306 = vmatpush1.msra.mxu0 0.0
  %307 = vmatprep.subr.mxu0 0.0
  %308 = vmatpush1.msra.mxu0 0.0
  %309 = vmatprep.subr.mxu0 0.0
  %310 = vmatpush1.msra.mxu0 0.0
  %311 = vmatprep.subr.mxu0 0.0
  %312 = vmatpush1.msra.mxu0 0.0
  %313 = vmatprep.subr.mxu0 0.0
  %314 = vmatpush1.msra.mxu0 0.0
  %315 = vmatprep.subr.mxu0 0.0
  %316 = vmatpush1.msra.mxu0 0.0
  %317 = vmatprep.subr.mxu0 0.0
  %318 = vmatpush1.msra.mxu0 0.0
  %319 = vmatprep.subr.mxu0 0.0
  %320 = vmatpush1.msra.mxu0 0.0
  %321 = vmatprep.subr.mxu0 0.0
  %322 = vmatpush1.msra.mxu0 0.0
  %323 = vmatprep.subr.mxu0 0.0
  %324 = vmatpush1.msra.mxu0 0.0
  %325 = vmatprep.subr.mxu0 0.0
  %326 = vmatpush1.msra.mxu0 0.0
  %327 = vmatprep.subr.mxu0 0.0
  %328 = vmatpush1.msra.mxu0 0.0
  %329 = vmatprep.subr.mxu0 0.0
  %330 = vmatpush1.msra.mxu0 0.0
  %331 = vmatprep.subr.mxu0 0.0
  %332 = vmatpush1.msra.mxu0 0.0
  %333 = vmatprep.subr.mxu0 0.0
  %334 = vmatpush1.msra.mxu0 0.0
  %335 = vmatprep.subr.mxu0 0.0
  %336 = vmatpush1.msra.mxu0 0.0
  %337 = vmatprep.subr.mxu0 0.0
  %338 = vmatpush1.msra.mxu0 0.0
  %339 = vmatprep.subr.mxu0 0.0
  %340 = vmatpush1.msra.mxu0 0.0
  %341 = vmatprep.mubr.f32.mxu0 0.0
  %342 = vmatmul.mubr.f32.gmra.mrb[0].mxu0 %v266
  %v343 = vpop.f32.mrb[0].mxu0
  %v344 = vadd.f32 0.0, %v343
  %v345 = vpop.f32.mrb[0].mxu0
  %346 = vmatprep.mubr.f32.mxu0 0.0
  %347 = vmatmul.mubr.f32.gmra.mrb[0].mxu0 %v269
  %v348 = vpop.f32.mrb[0].mxu0
  %v349 = vadd.f32 0.0, %v348
  %v350 = vpop.f32.mrb[0].mxu0
  %351 = vmatprep.mubr.f32.mxu0 0.0
  %352 = vmatmul.mubr.f32.gmra.mrb[0].mxu0 %v272
  %v353 = vpop.f32.mrb[0].mxu0
  %v354 = vadd.f32 0.0, %v353
  %v355 = vpop.f32.mrb[0].mxu0
  %356 = vmatprep.mubr.f32.mxu0 0.0
  %357 = vmatmul.mubr.f32.gmra.mrb[0].mxu0 %v275
  %v358 = vpop.f32.mrb[0].mxu0
  %v359 = vadd.f32 0.0, %v358
  %v360 = vpop.f32.mrb[0].mxu0
  %361 = vdwg.mxu0
  %362 = vset.pattern.permute.xlu0 1
  %363 = vperm.xlu0 %362, %v32
  %v364 = vpop.permute.xlu0 %363
  %366 = vset.pattern.permute.xlu0 1
  %367 = vperm.xlu0 %366, %v33
  %v368 = vpop.permute.xlu0 %367
  %370 = vset.pattern.permute.xlu0 1
  %371 = vperm.xlu0 %370, %v34
  %v372 = vpop.permute.xlu0 %371
  %374 = vset.pattern.permute.xlu0 1
  %375 = vperm.xlu0 %374, %v35
  %v376 = vpop.permute.xlu0 %375
  %v379 = vsel %vm158, %v344, 0
  %v382 = vsel %vm158, %v349, 0
  %v385 = vsel %vm158, %v354, 0
  %v388 = vsel %vm158, %v359, 0
  %390 = vmatprep.subr.mxu0 0.0
  %391 = vmatpush1.msra.mxu0 %v20
  %392 = vmatprep.subr.mxu0 0.0
  %393 = vmatpush1.msra.mxu0 %v21
  %394 = vmatprep.subr.mxu0 0.0
  %395 = vmatpush1.msra.mxu0 %v22
  %396 = vmatprep.subr.mxu0 0.0
  %397 = vmatpush1.msra.mxu0 %v23
  %398 = vmatprep.subr.mxu0 0.0
  %399 = vmatpush1.msra.mxu0 %v24
  %400 = vmatprep.subr.mxu0 0.0
  %401 = vmatpush1.msra.mxu0 %v25
  %402 = vmatprep.subr.mxu0 0.0
  %403 = vmatpush1.msra.mxu0 %v26
  %404 = vmatprep.subr.mxu0 0.0
  %405 = vmatpush1.msra.mxu0 %v27
  %406 = vmatprep.subr.mxu0 0.0
  %407 = vmatpush1.msra.mxu0 0.0
  %408 = vmatprep.subr.mxu0 0.0
  %409 = vmatpush1.msra.mxu0 0.0
  %410 = vmatprep.subr.mxu0 0.0
  %411 = vmatpush1.msra.mxu0 0.0
  %412 = vmatprep.subr.mxu0 0.0
  %413 = vmatpush1.msra.mxu0 0.0
  %414 = vmatprep.subr.mxu0 0.0
  %415 = vmatpush1.msra.mxu0 0.0
  %416 = vmatprep.subr.mxu0 0.0
  %417 = vmatpush1.msra.mxu0 0.0
  %418 = vmatprep.subr.mxu0 0.0
  %419 = vmatpush1.msra.mxu0 0.0
  %420 = vmatprep.subr.mxu0 0.0
  %421 = vmatpush1.msra.mxu0 0.0
  %422 = vmatprep.subr.mxu0 0.0
  %423 = vmatpush1.msra.mxu0 0.0
  %424 = vmatprep.subr.mxu0 0.0
  %425 = vmatpush1.msra.mxu0 0.0
  %426 = vmatprep.subr.mxu0 0.0
  %427 = vmatpush1.msra.mxu0 0.0
  %428 = vmatprep.subr.mxu0 0.0
  %429 = vmatpush1.msra.mxu0 0.0
  %430 = vmatprep.subr.mxu0 0.0
  %431 = vmatpush1.msra.mxu0 0.0
  %432 = vmatprep.subr.mxu0 0.0
  %433 = vmatpush1.msra.mxu0 0.0
  %434 = vmatprep.subr.mxu0 0.0
  %435 = vmatpush1.msra.mxu0 0.0
  %436 = vmatprep.subr.mxu0 0.0
  %437 = vmatpush1.msra.mxu0 0.0
  %438 = vmatprep.subr.mxu0 0.0
  %439 = vmatpush1.msra.mxu0 0.0
  %440 = vmatprep.subr.mxu0 0.0
  %441 = vmatpush1.msra.mxu0 0.0
  %442 = vmatprep.subr.mxu0 0.0
  %443 = vmatpush1.msra.mxu0 0.0
  %444 = vmatprep.subr.mxu0 0.0
  %445 = vmatpush1.msra.mxu0 0.0
  %446 = vmatprep.subr.mxu0 0.0
  %447 = vmatpush1.msra.mxu0 0.0
  %448 = vmatprep.subr.mxu0 0.0
  %449 = vmatpush1.msra.mxu0 0.0
  %450 = vmatprep.subr.mxu0 0.0
  %451 = vmatpush1.msra.mxu0 0.0
  %452 = vmatprep.subr.mxu0 0.0
  %453 = vmatpush1.msra.mxu0 0.0
  %454 = vmatprep.mubr.f32.mxu0 0.0
  %455 = vmatmul.mubr.f32.gmra.mrb[0].mxu0 %v379
  %v456 = vpop.f32.mrb[0].mxu0
  %v457 = vadd.f32 %v364, %v456
  %v458 = vpop.f32.mrb[0].mxu0
  %459 = vmatprep.mubr.f32.mxu0 0.0
  %460 = vmatmul.mubr.f32.gmra.mrb[0].mxu0 %v382
  %v461 = vpop.f32.mrb[0].mxu0
  %v462 = vadd.f32 %v368, %v461
  %v463 = vpop.f32.mrb[0].mxu0
  %464 = vmatprep.mubr.f32.mxu0 0.0
  %465 = vmatmul.mubr.f32.gmra.mrb[0].mxu0 %v385
  %v466 = vpop.f32.mrb[0].mxu0
  %v467 = vadd.f32 %v372, %v466
  %v468 = vpop.f32.mrb[0].mxu0
  %469 = vmatprep.mubr.f32.mxu0 0.0
  %470 = vmatmul.mubr.f32.gmra.mrb[0].mxu0 %v388
  %v471 = vpop.f32.mrb[0].mxu0
  %v472 = vadd.f32 %v376, %v471
  %v473 = vpop.f32.mrb[0].mxu0
  %474 = vdwg.mxu0
  %v475 = vmax.f32 %v457, 0.0
  %v476 = vmax.f32 %v462, 0.0
  %v477 = vmax.f32 %v467, 0.0
  %v478 = vmax.f32 %v472, 0.0
  %v479 = vld [vmem:[%s2] sm:$0xff]
  %v480 = vld [vmem:[%s2 + $0x8] sm:$0xff]
  %v481 = vld [vmem:[%s2 + $0x10] sm:$0xff]
  %v482 = vld [vmem:[%s2 + $0x18] sm:$0xff]
  %v483 = vld [vmem:[%s2 + $0x20] sm:$0xff]
  %v484 = vld [vmem:[%s2 + $0x28] sm:$0xff]
  %v485 = vld [vmem:[%s2 + $0x30] sm:$0xff]
  %v486 = vld [vmem:[%s2 + $0x38] sm:$0xff]
  %v488 = vsel %vm158, %v475, 0
  %v491 = vsel %vm158, %v476, 0
  %v494 = vsel %vm158, %v477, 0
  %v497 = vsel %vm158, %v478, 0
  %499 = vmatprep.subr.mxu0 0.0
  %500 = vmatpush1.msra.mxu0 %v479
  %501 = vmatprep.subr.mxu0 0.0
  %502 = vmatpush1.msra.mxu0 %v480
  %503 = vmatprep.subr.mxu0 0.0
  %504 = vmatpush1.msra.mxu0 %v481
  %505 = vmatprep.subr.mxu0 0.0
  %506 = vmatpush1.msra.mxu0 %v482
  %507 = vmatprep.subr.mxu0 0.0
  %508 = vmatpush1.msra.mxu0 %v483
  %509 = vmatprep.subr.mxu0 0.0
  %510 = vmatpush1.msra.mxu0 %v484
  %511 = vmatprep.subr.mxu0 0.0
  %512 = vmatpush1.msra.mxu0 %v485
  %513 = vmatprep.subr.mxu0 0.0
  %514 = vmatpush1.msra.mxu0 %v486
  %515 = vmatprep.subr.mxu0 0.0
  %516 = vmatpush1.msra.mxu0 0.0
  %517 = vmatprep.subr.mxu0 0.0
  %518 = vmatpush1.msra.mxu0 0.0
  %519 = vmatprep.subr.mxu0 0.0
  %520 = vmatpush1.msra.mxu0 0.0
  %521 = vmatprep.subr.mxu0 0.0
  %522 = vmatpush1.msra.mxu0 0.0
  %523 = vmatprep.subr.mxu0 0.0
  %524 = vmatpush1.msra.mxu0 0.0
  %525 = vmatprep.subr.mxu0 0.0
  %526 = vmatpush1.msra.mxu0 0.0
  %527 = vmatprep.subr.mxu0 0.0
  %528 = vmatpush1.msra.mxu0 0.0
  %529 = vmatprep.subr.mxu0 0.0
  %530 = vmatpush1.msra.mxu0 0.0
  %531 = vmatprep.subr.mxu0 0.0
  %532 = vmatpush1.msra.mxu0 0.0
  %533 = vmatprep.subr.mxu0 0.0
  %534 = vmatpush1.msra.mxu0 0.0
  %535 = vmatprep.subr.mxu0 0.0
  %536 = vmatpush1.msra.mxu0 0.0
  %537 = vmatprep.subr.mxu0 0.0
  %538 = vmatpush1.msra.mxu0 0.0
  %539 = vmatprep.subr.mxu0 0.0
  %540 = vmatpush1.msra.mxu0 0.0
  %541 = vmatprep.subr.mxu0 0.0
  %542 = vmatpush1.msra.mxu0 0.0
  %543 = vmatprep.subr.mxu0 0.0
  %544 = vmatpush1.msra.mxu0 0.0
  %545 = vmatprep.subr.mxu0 0.0
  %546 = vmatpush1.msra.mxu0 0.0
  %547 = vmatprep.subr.mxu0 0.0
  %548 = vmatpush1.msra.mxu0 0.0
  %549 = vmatprep.subr.mxu0 0.0
  %550 = vmatpush1.msra.mxu0 0.0
  %551 = vmatprep.subr.mxu0 0.0
  %552 = vmatpush1.msra.mxu0 0.0
  %553 = vmatprep.subr.mxu0 0.0
  %554 = vmatpush1.msra.mxu0 0.0
  %555 = vmatprep.subr.mxu0 0.0
  %556 = vmatpush1.msra.mxu0 0.0
  %557 = vmatprep.subr.mxu0 0.0
  %558 = vmatpush1.msra.mxu0 0.0
  %559 = vmatprep.subr.mxu0 0.0
  %560 = vmatpush1.msra.mxu0 0.0
  %561 = vmatprep.subr.mxu0 0.0
  %562 = vmatpush1.msra.mxu0 0.0
  %563 = vmatprep.mubr.f32.mxu0 0.0
  %564 = vmatmul.mubr.f32.gmra.mrb[0].mxu0 %v488
  %v565 = vpop.f32.mrb[0].mxu0
  %v566 = vadd.f32 0.0, %v565
  %v567 = vpop.f32.mrb[0].mxu0
  %568 = vmatprep.mubr.f32.mxu0 0.0
  %569 = vmatmul.mubr.f32.gmra.mrb[0].mxu0 %v491
  %v570 = vpop.f32.mrb[0].mxu0
  %v571 = vadd.f32 0.0, %v570
  %v572 = vpop.f32.mrb[0].mxu0
  %573 = vmatprep.mubr.f32.mxu0 0.0
  %574 = vmatmul.mubr.f32.gmra.mrb[0].mxu0 %v494
  %v575 = vpop.f32.mrb[0].mxu0
  %v576 = vadd.f32 0.0, %v575
  %v577 = vpop.f32.mrb[0].mxu0
  %578 = vmatprep.mubr.f32.mxu0 0.0
  %579 = vmatmul.mubr.f32.gmra.mrb[0].mxu0 %v497
  %v580 = vpop.f32.mrb[0].mxu0
  %v581 = vadd.f32 0.0, %v580
  %v582 = vpop.f32.mrb[0].mxu0
  %583 = vdwg.mxu0
  %s584 = scalar_lea.vmem %s3, 64
  %v585 = vld [vmem:[%s584] sm:$0xff]
  %v586 = vld [vmem:[%s584 + $0x8] sm:$0xff]
  %v587 = vld [vmem:[%s584 + $0x10] sm:$0xff]
  %v588 = vld [vmem:[%s584 + $0x18] sm:$0xff]
  %589 = vset.pattern.permute.xlu0 2
  %590 = vperm.xlu0 %589, %v32
  %v591 = vpop.permute.xlu0 %590
  %593 = vset.pattern.permute.xlu0 2
  %594 = vperm.xlu0 %593, %v33
  %v595 = vpop.permute.xlu0 %594
  %597 = vset.pattern.permute.xlu0 2
  %598 = vperm.xlu0 %597, %v34
  %v599 = vpop.permute.xlu0 %598
  %601 = vset.pattern.permute.xlu0 2
  %602 = vperm.xlu0 %601, %v35
  %v603 = vpop.permute.xlu0 %602
  %v606 = vsel %vm40, %v585, 0
  %v609 = vsel %vm40, %v586, 0
  %v612 = vsel %vm40, %v587, 0
  %v615 = vsel %vm40, %v588, 0
  %617 = vmatprep.subr.mxu0 0.0
  %618 = vmatpush1.msra.mxu0 %v566
  %619 = vmatprep.subr.mxu0 0.0
  %620 = vmatpush1.msra.mxu0 %v571
  %621 = vmatprep.subr.mxu0 0.0
  %622 = vmatpush1.msra.mxu0 %v576
  %623 = vmatprep.subr.mxu0 0.0
  %624 = vmatpush1.msra.mxu0 %v581
  %625 = vmatprep.subr.mxu0 0.0
  %626 = vmatpush1.msra.mxu0 0.0
  %627 = vmatprep.subr.mxu0 0.0
  %628 = vmatpush1.msra.mxu0 0.0
  %629 = vmatprep.subr.mxu0 0.0
  %630 = vmatpush1.msra.mxu0 0.0
  %631 = vmatprep.subr.mxu0 0.0
  %632 = vmatpush1.msra.mxu0 0.0
  %633 = vmatprep.subr.mxu0 0.0
  %634 = vmatpush1.msra.mxu0 0.0
  %635 = vmatprep.subr.mxu0 0.0
  %636 = vmatpush1.msra.mxu0 0.0
  %637 = vmatprep.subr.mxu0 0.0
  %638 = vmatpush1.msra.mxu0 0.0
  %639 = vmatprep.subr.mxu0 0.0
  %640 = vmatpush1.msra.mxu0 0.0
  %641 = vmatprep.subr.mxu0 0.0
  %642 = vmatpush1.msra.mxu0 0.0
  %643 = vmatprep.subr.mxu0 0.0
  %644 = vmatpush1.msra.mxu0 0.0
  %645 = vmatprep.subr.mxu0 0.0
  %646 = vmatpush1.msra.mxu0 0.0
  %647 = vmatprep.subr.mxu0 0.0
  %648 = vmatpush1.msra.mxu0 0.0
  %649 = vmatprep.subr.mxu0 0.0
  %650 = vmatpush1.msra.mxu0 0.0
  %651 = vmatprep.subr.mxu0 0.0
  %652 = vmatpush1.msra.mxu0 0.0
  %653 = vmatprep.subr.mxu0 0.0
  %654 = vmatpush1.msra.mxu0 0.0
  %655 = vmatprep.subr.mxu0 0.0
  %656 = vmatpush1.msra.mxu0 0.0
  %657 = vmatprep.subr.mxu0 0.0
  %658 = vmatpush1.msra.mxu0 0.0
  %659 = vmatprep.subr.mxu0 0.0
  %660 = vmatpush1.msra.mxu0 0.0
  %661 = vmatprep.subr.mxu0 0.0
  %662 = vmatpush1.msra.mxu0 0.0
  %663 = vmatprep.subr.mxu0 0.0
  %664 = vmatpush1.msra.mxu0 0.0
  %665 = vmatprep.subr.mxu0 0.0
  %666 = vmatpush1.msra.mxu0 0.0
  %667 = vmatprep.subr.mxu0 0.0
  %668 = vmatpush1.msra.mxu0 0.0
  %669 = vmatprep.subr.mxu0 0.0
  %670 = vmatpush1.msra.mxu0 0.0
  %671 = vmatprep.subr.mxu0 0.0
  %672 = vmatpush1.msra.mxu0 0.0
  %673 = vmatprep.subr.mxu0 0.0
  %674 = vmatpush1.msra.mxu0 0.0
  %675 = vmatprep.subr.mxu0 0.0
  %676 = vmatpush1.msra.mxu0 0.0
  %677 = vmatprep.subr.mxu0 0.0
  %678 = vmatpush1.msra.mxu0 0.0
  %679 = vmatprep.subr.mxu0 0.0
  %680 = vmatpush1.msra.mxu0 0.0
  %681 = vmatprep.mubr.f32.mxu0 0.0
  %682 = vmatmul.mubr.f32.gmra.mrb[0].mxu0 %v606
  %v683 = vpop.f32.mrb[0].mxu0
  %v684 = vadd.f32 %v591, %v683
  %v685 = vpop.f32.mrb[0].mxu0
  %686 = vmatprep.mubr.f32.mxu0 0.0
  %687 = vmatmul.mubr.f32.gmra.mrb[0].mxu0 %v609
  %v688 = vpop.f32.mrb[0].mxu0
  %v689 = vadd.f32 %v595, %v688
  %v690 = vpop.f32.mrb[0].mxu0
  %691 = vmatprep.mubr.f32.mxu0 0.0
  %692 = vmatmul.mubr.f32.gmra.mrb[0].mxu0 %v612
  %v693 = vpop.f32.mrb[0].mxu0
  %v694 = vadd.f32 %v599, %v693
  %v695 = vpop.f32.mrb[0].mxu0
  %696 = vmatprep.mubr.f32.mxu0 0.0
  %697 = vmatmul.mubr.f32.gmra.mrb[0].mxu0 %v615
  %v698 = vpop.f32.mrb[0].mxu0
  %v699 = vadd.f32 %v603, %v698
  %v700 = vpop.f32.mrb[0].mxu0
  %701 = vdwg.mxu0
  %v702 = vmax.f32 %v684, 0.0
  %v703 = vmax.f32 %v689, 0.0
  %v704 = vmax.f32 %v694, 0.0
  %v705 = vmax.f32 %v699, 0.0
  %706 = vset.pattern.permute.xlu0 3
  %707 = vperm.xlu0 %706, %v32
  %v708 = vpop.permute.xlu0 %707
  %710 = vset.pattern.permute.xlu0 3
  %711 = vperm.xlu0 %710, %v33
  %v712 = vpop.permute.xlu0 %711
  %714 = vset.pattern.permute.xlu0 3
  %715 = vperm.xlu0 %714, %v34
  %v716 = vpop.permute.xlu0 %715
  %718 = vset.pattern.permute.xlu0 3
  %719 = vperm.xlu0 %718, %v35
  %v720 = vpop.permute.xlu0 %719
  %v722 = vmul.f32 %v702, %v708
  %v723 = vmul.f32 %v703, %v712
  %v724 = vmul.f32 %v704, %v716
  %v725 = vmul.f32 %v705, %v720
  %vm726 = vcmask 64512
  %v727 = vsel %vm726, %v722, 0.0
  %v728 = vsel %vm726, %v723, 0.0
  %v729 = vadd.f32 %v727, %v728
  %v730 = vsel %vm726, %v724, 0.0
  %v731 = vadd.f32 %v729, %v730
  %v732 = vsel %vm726, %v725, 0.0
  %v733 = vadd.f32 %v731, %v732
  %v734 = vrot.slane %v733, 4
  %v735 = vadd.f32 %v733, %v734
  %v736 = vrot.slane %v735, 2
  %v737 = vadd.f32 %v735, %v736
  %v738 = vrot.slane %v737, 1
  %v739 = vadd.f32 %v737, %v738
  %740 = vset.pattern.permute.xlu0 4
  %741 = vperm.xlu0 %740, %v32
  %v742 = vpop.permute.xlu0 %741
  %v744 = vadd.f32 %v739, %v742
  %vm745 = vcmask 57344
  %746 = vst.msk [vmem:[%s5] sm:$0x1] %vm745, %v744
  // Predicated region
  $region22: #{gcn_forward_batched.1} parent=0 // pred_check
    _
  $region23: #{gcn_forward_batched.1} parent=0 // pred_check_branch
    %748 = sbr.rel (0) target = $region25
  $region24: #{gcn_forward_batched.1} parent=0 // pred_region
    _
  $region25: #{gcn_forward_batched.1} parent=0 // pred_fallthru
    _
  // Predicated region
  $region26: #{gcn_forward_batched.1} parent=0 // pred_check
    _
  $region27: #{gcn_forward_batched.1} parent=0 // pred_check_branch
    %750 = sbr.rel (0) target = $region29
  $region28: #{gcn_forward_batched.1} parent=0 // pred_region
    _
  $region29: #{gcn_forward_batched.1} parent=0 // pred_fallthru
    _

</llo_original>
